<compile_context>
chip_gen: v7x
topology: tpu7x:2x2x1
jax: 0.10.0
libtpu: 0.0.40
codegen_flags: <defaults>
</compile_context>

<pallas_src>
import jax
import jax.numpy as jnp
from jax.experimental import pallas as pl
from jax.experimental.pallas import tpu as pltpu

_TARGET_TILE_BYTES = 2 * 1024 * 1024   # per-buffer block size target (~2 MiB)
_SUBLANE_PACK = 32                     # covers f32 (8), bf16 (16), int8/fp8 (32)
_WIDTHS = (4096, 2048, 1024, 512, 256, 128)


def _identity_kernel(attr_ref, out_ref):
    # Pure copy of one lane-dense (tile_rows, width) block.
    out_ref[...] = attr_ref[...]


def _identity_copy_pallas(edge_attr):
    """Materialize a fresh copy of edge_attr via a lane-dense Pallas kernel."""
    E = edge_attr.shape[0]
    dtype = edge_attr.dtype
    if E == 0:
        return edge_attr

    # Pick the widest lane dimension that divides E (no pad / no slice needed).
    width = None
    for w in _WIDTHS:
        if E % w == 0:
            width = w
            break

    if width is None:
        # Ragged fallback: pad only to the next multiple of 512 (tiny tail pad).
        width = 512
        e_pad = pl.cdiv(E, width) * width
        flat = jnp.pad(edge_attr, (0, e_pad - E))
    else:
        e_pad = E
        flat = edge_attr

    rows = e_pad // width
    attr2d = flat.reshape(rows, width)          # contiguous reshape: free

    itemsize = attr2d.dtype.itemsize
    tile_rows = max(1, _TARGET_TILE_BYTES // (width * itemsize))
    if tile_rows >= rows:
        tile_rows = rows                        # full-extent block: always legal
    else:
        tile_rows = max(_SUBLANE_PACK, (tile_rows // _SUBLANE_PACK) * _SUBLANE_PACK)

    grid = (pl.cdiv(rows, tile_rows),)          # last block may be partial (masked)
    spec = pl.BlockSpec((tile_rows, width), lambda i: (i, 0))

    out2d = pl.pallas_call(
        _identity_kernel,
        out_shape=jax.ShapeDtypeStruct((rows, width), dtype),
        grid=grid,
        in_specs=[spec],
        out_specs=spec,
        compiler_params=pltpu.CompilerParams(
            dimension_semantics=("parallel",),
        ),
    )(attr2d)

    out = out2d.reshape(-1)
    if e_pad != E:
        out = out[:E]
    return out


def norm_identity(edge_index, edge_attr, N, *, materialize=False):
    """Pallas equivalent of NormIdentity.forward: returns edge_attr unchanged.

    edge_index: (2, E) int array   (unused by this module)
    edge_attr:  (E,)  float array
    N:          python int         (unused by this module)

    NormIdentity is a pure identity, so the optimal implementation is to return
    the input as-is (zero HBM traffic).  Pass materialize=True to force a fresh
    output buffer produced by the Pallas identity-copy kernel.
    """
    del edge_index, N  # NormIdentity ignores these.
    if not materialize:
        return edge_attr
    return _identity_copy_pallas(edge_attr)


if __name__ == "__main__":
    key = jax.random.PRNGKey(0)
    N, E = 16, 200   # E not a multiple of 128 -> exercises the ragged fallback
    k1, k2, k3, k4 = jax.random.split(key, 4)

    rows = jax.random.randint(k1, (E,), 0, N, dtype=jnp.int32)
    cols = jax.random.randint(k2, (E,), 0, N, dtype=jnp.int32)
    edge_index = jnp.stack([rows, cols])                       # (2, E)
    edge_attr = jax.random.uniform(k3, (E,), jnp.float32, 0.1, 1.0)

    # 1) Default (optimal) path: no-op, returns the input unchanged.
    out_fast = norm_identity(edge_index, edge_attr, N)
    assert out_fast.shape == (E,) and out_fast.dtype == edge_attr.dtype
    assert jnp.array_equal(out_fast, edge_attr)

    # 2) Pallas identity-copy kernel, ragged-E path.
    out_pallas = jax.block_until_ready(
        norm_identity(edge_index, edge_attr, N, materialize=True))
    assert out_pallas.shape == (E,) and out_pallas.dtype == edge_attr.dtype
    assert jnp.array_equal(out_pallas, edge_attr)

    # 3) Pallas identity-copy kernel, lane-aligned fast path (no pad/slice).
    E2 = 4096
    edge_attr2 = jax.random.uniform(k4, (E2,), jnp.float32, 0.1, 1.0)
    edge_index2 = jnp.zeros((2, E2), jnp.int32)
    out_pallas2 = jax.block_until_ready(
        norm_identity(edge_index2, edge_attr2, N, materialize=True))
    assert out_pallas2.shape == (E2,) and jnp.array_equal(out_pallas2, edge_attr2)

    print("KERNEL_OK")
</pallas_src>

<mosaic_0001>
module attributes {stable_mosaic.version = 11 : i64} {
  func.func @_identity_kernel(%arg0: i32, %arg1: memref<1x512xf32, #tpu.memory_space<vmem>>, %arg2: memref<1x512xf32, #tpu.memory_space<vmem>>) attributes {dimension_semantics = [#tpu.dimension_semantics<parallel>], iteration_bounds = array<i64: 1>, scalar_prefetch = 0 : i64, scratch_operands = 0 : i64, tpu.core_type = #tpu.core_type<tc>, window_params = [{transform_indices = @transform_0, window_bounds = array<i64: 1, 512>}, {transform_indices = @transform_1, window_bounds = array<i64: 1, 512>}]} {
    %c0 = arith.constant 0 : index
    %c0_0 = arith.constant 0 : index
    %0 = vector.load %arg1[%c0, %c0_0] : memref<1x512xf32, #tpu.memory_space<vmem>>, vector<1x512xf32>
    %c0_1 = arith.constant 0 : index
    %c0_2 = arith.constant 0 : index
    %1 = vector.load %arg2[%c0_1, %c0_2] : memref<1x512xf32, #tpu.memory_space<vmem>>, vector<1x512xf32>
    tpu.vector_store %arg2[%c0_1, %c0_2], %0 {strides = array<i32>} : memref<1x512xf32, #tpu.memory_space<vmem>>, vector<1x512xf32>,
    return
  }
  func.func @transform_0(%arg0: i32) -> (i32, i32) {
    %c0_i32 = arith.constant 0 : i32
    %c0_i32_0 = arith.constant 0 : i32
    return %arg0, %c0_i32 : i32, i32
  }
  func.func @transform_1(%arg0: i32) -> (i32, i32) {
    %c0_i32 = arith.constant 0 : i32
    %c0_i32_0 = arith.constant 0 : i32
    return %arg0, %c0_i32 : i32, i32
  }
}

</mosaic_0001>

<llo_original>
// kernel: tpu_custom_call.1
$region0: #{tpu_custom_call.1}
  #allocation0 [shape = 'u32[]', space=smem, size = 0x4, offset = 0x4, fixed_abs, tag = 'smem constant byte address 0x4 - core index']
  #allocation1 [shape = 'u32[144,128]{1,0:T(1,128)}', space=vmem, size = 0x12000, scoped, tag = 'internal scratch']
  %s0 = inlined_call_operand.hbm [shape: f32[1,512], index: 0, kind: input, shape index: {}]
  %s1 = inlined_call_operand.hbm [shape: f32[1,512], index: 1, kind: output, shape index: {}]
  %s2 = sld [smem:[#allocation0]]
  $region18: #{tpu_custom_call.1} parent=0
    _
  %s4 = ssub.s32 1, %s2
  %s5 = scalar_select 0, %s4, %s2
  $region1: #{tpu_custom_call.1} parent=0
    #allocation2 [shape = 'u8[2048]{0}', space=vmem, size = 0x800, scoped, tag = 'input window, operand 0, single buffered']
    #allocation3 [shape = 's32[1]{0}', space=sflag, size = 0x4, scoped, tag = 'scoped memory for tpu_custom_call.1']
    #allocation4 [shape = 's32[1]{0}', space=sflag, size = 0x4, scoped, tag = 'scoped memory for tpu_custom_call.1']
    #allocation5 [shape = 'u8[2048]{0}', space=vmem, size = 0x800, scoped, tag = 'output window, operand 0, single buffered']
    %6 = vsyncpa [#allocation3], 0
    %7 = vsyncpa [#allocation4], 0
    // Predicated region
    $region2: #{tpu_custom_call.1} parent=1 // pred_check
      _
    $region3: #{tpu_custom_call.1} parent=1 // pred_check_branch
      %9 = sbr.rel (0) target = $region5
    $region4: #{tpu_custom_call.1} parent=1 // pred_region
      %s11 = ssub.s32 64, 64
      %12 = vsyncadd [#allocation3], %s11
      %s14 = sshll.u32 [#allocation2], 4
      %s15 = int_to_ptr.vmem [resolvable:$true] %s14
      %17 = dma.hbm_to_vmem [thread:$0]  %s0, 64, %s15, [#allocation3]
    $region5: #{tpu_custom_call.1} parent=1 // pred_fallthru
      _
    // Predicated region
    $region6: #{tpu_custom_call.1} parent=1 // pred_check
      _
    $region7: #{tpu_custom_call.1} parent=1 // pred_check_branch
      %19 = sbr.rel (0) target = $region9
    $region8: #{tpu_custom_call.1} parent=1 // pred_region
      %20 = dma.done [#allocation3], 64
    $region9: #{tpu_custom_call.1} parent=1 // pred_fallthru
      _
    %v21 = vld [vmem:[#allocation2] sm:$0xf]
    %v22 = vlaneseq
    %vm23 = vcmp.ge.s32.totalorder %v22, 0
    %vm24 = vcmp.lt.s32.totalorder %v22, 512
    %vm25 = vmand %vm23, %vm24
    %26 = vst.msk [vmem:[#allocation5] sm:$0xf] %vm25, %v21
    // Predicated region
    $region10: #{tpu_custom_call.1} parent=1 // pred_check
      _
    $region11: #{tpu_custom_call.1} parent=1 // pred_check_branch
      %28 = sbr.rel (0) target = $region13
    $region12: #{tpu_custom_call.1} parent=1 // pred_region
      %s30 = ssub.s32 64, 64
      %31 = vsyncadd [#allocation4], %s30
      %s33 = sshll.u32 [#allocation5], 4
      %s34 = int_to_ptr.vmem [resolvable:$true] %s33
      %36 = dma.vmem_to_hbm [thread:$0]  %s34, 64, %s1, [#allocation4]
    $region13: #{tpu_custom_call.1} parent=1 // pred_fallthru
      _
    // Predicated region
    $region14: #{tpu_custom_call.1} parent=1 // pred_check
      _
    $region15: #{tpu_custom_call.1} parent=1 // pred_check_branch
      %38 = sbr.rel (0) target = $region17
    $region16: #{tpu_custom_call.1} parent=1 // pred_region
      %39 = dma.done [#allocation4], 64
    $region17: #{tpu_custom_call.1} parent=1 // pred_fallthru
      _
    %40 = vsyncpa [#allocation3], 1
    %41 = vsyncpa [#allocation4], 1

</llo_original>
